<compile_context>
chip_gen: v5e
topology: v5e:2x2
jax: 0.10.0
libtpu: 0.0.40
codegen_flags: <defaults>
</compile_context>

<pallas_src>
import functools

import jax
import jax.numpy as jnp
from jax import lax
from jax.experimental import pallas as pl
from jax.experimental.pallas import tpu as pltpu


def _round_up(x, m):
    return (x + m - 1) // m * m


@functools.lru_cache(maxsize=None)
def _vmem_capacity_bytes():
    """Physical VMEM per core; conservative v7x default if the query fails."""
    try:
        info = pltpu.get_tpu_info()
        cap = int(getattr(info, "vmem_capacity_bytes", 0))
        if cap > 0:
            return cap
    except Exception:
        pass
    return 64 * 1024 * 1024


def _io_act_bytes(tm, Dp, wb):
    # double-buffered x and out row tiles (f32) + f32 activation + bf16 cast copy
    return 2 * tm * Dp * 4 * 2 + tm * Dp * (4 + wb)


def _resident_vmem_bytes(tm, Dp, L, wb):
    # whole (L,Dp,Dp) weight stack + (L,1,Dp) biases; counted x2 because the
    # pipeline allocates two buffers even though (constant block index) they
    # are only DMA'd from HBM once.
    return _io_act_bytes(tm, Dp, wb) + 2 * L * (Dp * Dp * wb + Dp * 4)


def _streamed_vmem_bytes(tm, Dp, L, wb):
    del L
    # per-layer double-buffered weight/bias + carried activation scratch
    return _io_act_bytes(tm, Dp, wb) + tm * Dp * 4 + 2 * (Dp * Dp * wb + Dp * 4)


def _pick_tm(M, tm_max):
    """Row tile: multiple of 8, <= tm_max, >=2 tiles when possible (v7x has two
    TensorCores on the 'parallel' row axis), and <=15% padded-row waste."""
    Mp8 = _round_up(max(M, 1), 8)
    cap = tm_max
    if Mp8 > 8:
        cap = min(cap, _round_up((Mp8 + 1) // 2, 8))
    cap = max(8, min(cap, Mp8))
    cap = max(8, (cap // 8) * 8)
    cands = sorted(
        {cap} | {t for t in (1024, 768, 512, 384, 256, 192, 128, 96, 64, 32, 16, 8)
                 if t <= cap},
        reverse=True)
    best = None
    for t in cands:
        mp = _round_up(M, t)
        pad = mp - M
        if pad / mp <= 0.15:
            return t
        if best is None or pad < best[1]:
            best = (t, pad)
    return best[0]


# ---------------------------------------------------------------------------
# Kernels
# ---------------------------------------------------------------------------
def _supernet_resident_kernel(x_ref, w_ref, b_ref, o_ref):
    """All L folded weights VMEM-resident; layers looped inside the body.

    x_ref : VMEM (tm, Dp)      f32 input rows (one row tile per grid step)
    w_ref : VMEM (L, Dp, Dp)   bf16 folded weights (x @ W layout), fetched once
    b_ref : VMEM (L, 1, Dp)    f32 folded biases
    o_ref : VMEM (tm, Dp)      f32 output rows
    """
    n_layers = w_ref.shape[0]
    h0 = x_ref[...].astype(jnp.float32)

    def body(l, h):
        y = jnp.dot(h.astype(w_ref.dtype), w_ref[l],
                    preferred_element_type=jnp.float32)
        y = y + b_ref[l].astype(jnp.float32)
        # ReLU; dropout(p=0.0) is identity.
        # TODO(synk): dropout with p > 0 (training mode) would need pltpu.prng_*.
        return jnp.maximum(y, 0.0)

    o_ref[...] = lax.fori_loop(0, n_layers, body, h0).astype(o_ref.dtype)


def _supernet_streamed_kernel(x_ref, w_ref, b_ref, o_ref, h_ref):
    """Fallback when weights don't fit VMEM: layer axis on the grid, weights
    streamed per row tile, activation carried in a VMEM scratch."""
    layer = pl.program_id(1)
    last = pl.num_programs(1) - 1

    @pl.when(layer == 0)
    def _():
        h_ref[...] = x_ref[...].astype(jnp.float32)

    y = jnp.dot(h_ref[...].astype(w_ref.dtype), w_ref[0],
                preferred_element_type=jnp.float32)
    y = jnp.maximum(y + b_ref[0].astype(jnp.float32), 0.0)

    @pl.when(layer != last)
    def _():
        h_ref[...] = y

    @pl.when(layer == last)
    def _():
        o_ref[...] = y.astype(o_ref.dtype)   # write output directly, no copy


# ---------------------------------------------------------------------------
# pallas_call wrapper
# ---------------------------------------------------------------------------
def _supernet_pallas(x2d, W_eff, b_eff, *, tm):
    Mp, Dp = x2d.shape
    L = W_eff.shape[0]
    n_row_tiles = Mp // tm
    wb = jnp.dtype(W_eff.dtype).itemsize

    budget = int(_vmem_capacity_bytes() * 0.8)   # headroom for Mosaic internals
    resident_bytes = _resident_vmem_bytes(tm, Dp, L, wb)
    streamed_bytes = _streamed_vmem_bytes(tm, Dp, L, wb)
    flops = 2 * Mp * Dp * Dp * L

    if resident_bytes <= budget:
        grid = (n_row_tiles,)
        in_specs = [
            pl.BlockSpec((tm, Dp), lambda i: (i, 0)),        # x rows
            # Full weight/bias stacks; constant block index -> DMA'd from HBM
            # exactly once, then reused by every row tile.
            pl.BlockSpec((L, Dp, Dp), lambda i: (0, 0, 0)),
            pl.BlockSpec((L, 1, Dp), lambda i: (0, 0, 0)),
        ]
        out_specs = pl.BlockSpec((tm, Dp), lambda i: (i, 0))
        scratch = []
        kernel = _supernet_resident_kernel
        dims = ("parallel",)
        bytes_accessed = 2 * Mp * Dp * 4 + L * (Dp * Dp * wb + Dp * 4)
        vmem_limit = min(budget, max(resident_bytes + (4 << 20), 32 << 20))
    else:
        # TODO(synk): for Dp so large that even one double-buffered (Dp,Dp)
        # weight does not fit (~Dp >= 4K bf16 on v7x), add a K/N weight tiling axis.
        grid = (n_row_tiles, L)
        in_specs = [
            pl.BlockSpec((tm, Dp), lambda i, l: (i, 0)),
            pl.BlockSpec((1, Dp, Dp), lambda i, l: (l, 0, 0)),
            pl.BlockSpec((1, 1, Dp), lambda i, l: (l, 0, 0)),
        ]
        out_specs = pl.BlockSpec((tm, Dp), lambda i, l: (i, 0))
        scratch = [pltpu.VMEM((tm, Dp), jnp.float32)]
        kernel = _supernet_streamed_kernel
        dims = ("parallel", "arbitrary")
        bytes_accessed = (2 * Mp * Dp * 4
                          + n_row_tiles * L * (Dp * Dp * wb + Dp * 4))
        vmem_limit = min(budget, max(streamed_bytes + (4 << 20), 32 << 20))

    return pl.pallas_call(
        kernel,
        out_shape=jax.ShapeDtypeStruct((Mp, Dp), x2d.dtype),
        grid=grid,
        in_specs=in_specs,
        out_specs=out_specs,
        scratch_shapes=scratch,
        compiler_params=pltpu.CompilerParams(
            dimension_semantics=dims,
            vmem_limit_bytes=int(vmem_limit),
        ),
        cost_estimate=pl.CostEstimate(
            flops=flops, transcendentals=0, bytes_accessed=int(bytes_accessed)),
    )(x2d, W_eff, b_eff)


@functools.partial(jax.jit, static_argnames=("tm_max", "weight_dtype"))
def supernet_forward(x, params, *, tm_max=512, weight_dtype=jnp.bfloat16):
    """x: (batch, seq, d_model) float32 -> same shape."""
    B, S, D = x.shape
    M = B * S
    L = len(params)

    # --- fold arch weights (softmax over 2 scalars + linear combine is glue) --
    W_list, b_list = [], []
    for (W1, b1, W2, b2, arch) in params:
        w = jax.nn.softmax(arch.astype(jnp.float32))
        W_list.append((w[0] * W1 + w[1] * W2).astype(weight_dtype))   # (D, D)
        b_list.append((w[0] * b1 + w[1] * b2).astype(jnp.float32))    # (1, D)
    W_eff = jnp.stack(W_list)                      # (L, D, D)  bf16
    b_eff = jnp.stack(b_list).reshape(L, 1, D)     # (L, 1, D)  f32

    # --- tile selection & padding to lane-dense / sublane-aligned shapes ------
    Dp = _round_up(D, 128)
    wb = jnp.dtype(weight_dtype).itemsize
    budget = int(_vmem_capacity_bytes() * 0.8)
    tm = _pick_tm(M, tm_max)
    while tm > 8 and _streamed_vmem_bytes(tm, Dp, L, wb) > budget:
        tm = max(8, _round_up(tm // 2, 8))
    Mp = _round_up(M, tm)

    x2d = jnp.pad(x.reshape(M, D), ((0, Mp - M), (0, Dp - D)))
    W_eff = jnp.pad(W_eff, ((0, 0), (0, Dp - D), (0, Dp - D)))
    b_eff = jnp.pad(b_eff, ((0, 0), (0, 0), (0, Dp - D)))
    # Padded lanes: x cols are 0, weight rows/cols are 0, bias is 0
    # -> relu(0) = 0 forever, so padding stays exactly zero through all layers;
    # padded rows are sliced off below.

    out = _supernet_pallas(x2d, W_eff, b_eff, tm=tm)
    return out[:M, :D].reshape(B, S, D)


# ---------------------------------------------------------------------------
# Params / reference / self-test
# ---------------------------------------------------------------------------
def init_supernet_params(key, num_layer, d_model):
    """Deterministic init mirroring nn.Linear defaults (uniform +-1/sqrt(fan_in))."""
    params = []
    bound = 1.0 / jnp.sqrt(jnp.float32(d_model))
    for _ in range(num_layer):
        key, k1, k2, k3, k4 = jax.random.split(key, 5)
        W1 = jax.random.uniform(k1, (d_model, d_model), jnp.float32, -bound, bound)
        b1 = jax.random.uniform(k2, (1, d_model), jnp.float32, -bound, bound)
        W2 = jax.random.uniform(k3, (d_model, d_model), jnp.float32, -bound, bound)
        b2 = jax.random.uniform(k4, (1, d_model), jnp.float32, -bound, bound)
        arch = jnp.ones((2,), jnp.float32) / 2.0   # nn.Parameter(torch.ones(2)/2)
        params.append((W1, b1, W2, b2, arch))
    return params


def supernet_reference(x, params):
    """Pure-JAX f32 reference (matches the PyTorch module)."""
    B, S, D = x.shape
    h = x.reshape(B * S, D)
    for (W1, b1, W2, b2, arch) in params:
        w = jax.nn.softmax(arch)
        y = w[0] * (h @ W1 + b1) + w[1] * (h @ W2 + b2)
        h = jnp.maximum(y, 0.0)
    return h.reshape(B, S, D)


if __name__ == "__main__":
    num_layer = 2
    d_model = 32
    batch, seq = 2, 8

    key = jax.random.PRNGKey(0)
    key, kx = jax.random.split(key)
    x = jax.random.normal(kx, (batch, seq, d_model), jnp.float32)
    params = init_supernet_params(key, num_layer, d_model)

    out = supernet_forward(x, params)
    out = jax.block_until_ready(out)

    ref = supernet_reference(x, params)
    assert out.shape == (batch, seq, d_model)
    # bf16 weights on the MXU (f32 accumulate / epilogue) -> relaxed tolerance.
    assert jnp.allclose(out, ref, atol=3e-2, rtol=3e-2), "mismatch vs reference"

    print("KERNEL_OK")
</pallas_src>

<mosaic_0001>
module attributes {stable_mosaic.version = 11 : i64} {
  func.func @_supernet_resident_kernel(%arg0: i32, %arg1: memref<8x128xf32, #tpu.memory_space<vmem>>, %arg2: memref<2x128x128xbf16, #tpu.memory_space<vmem>>, %arg3: memref<2x1x128xf32, #tpu.memory_space<vmem>>, %arg4: memref<8x128xf32, #tpu.memory_space<vmem>>) attributes {dimension_semantics = [#tpu.dimension_semantics<parallel>], iteration_bounds = array<i64: 2>, scalar_prefetch = 0 : i64, scratch_operands = 0 : i64, tpu.core_type = #tpu.core_type<tc>, window_params = [{transform_indices = @transform_0, window_bounds = array<i64: 8, 128>}, {pipeline_mode = #tpu.pipeline_mode<synchronous>, transform_indices = @transform_1, window_bounds = array<i64: 2, 128, 128>}, {pipeline_mode = #tpu.pipeline_mode<synchronous>, transform_indices = @transform_2, window_bounds = array<i64: 2, 1, 128>}, {transform_indices = @transform_3, window_bounds = array<i64: 8, 128>}]} {
    %c0 = arith.constant 0 : index
    %c0_0 = arith.constant 0 : index
    %0 = vector.load %arg1[%c0, %c0_0] : memref<8x128xf32, #tpu.memory_space<vmem>>, vector<8x128xf32>
    %c0_i32 = arith.constant 0 : i32
    %c2_i32 = arith.constant 2 : i32
    %1 = arith.addi %c0_i32, %c2_i32 : i32
    %c1_i32 = arith.constant 1 : i32
    %2 = scf.for %arg5 = %c0_i32 to %1 step %c1_i32 iter_args(%arg6 = %0) -> (vector<8x128xf32>)  : i32 {
      %4 = arith.truncf %arg6 : vector<8x128xf32> to vector<8x128xbf16>
      %5 = arith.index_cast %arg5 : i32 to index
      %c0_4 = arith.constant 0 : index
      %c0_5 = arith.constant 0 : index
      %6 = vector.load %arg2[%5, %c0_4, %c0_5] : memref<2x128x128xbf16, #tpu.memory_space<vmem>>, vector<1x128x128xbf16>
      %7 = vector.shape_cast %6 : vector<1x128x128xbf16> to vector<128x128xbf16>
      %cst = arith.constant dense<0.000000e+00> : vector<8x128xf32>
      %8 = tpu.matmul %4, %7, %cst {dimension_numbers = #tpu.dot_dimension_numbers<[1], [0], [0], [1], [0, 0, 1, 1], [], []>} : vector<8x128xbf16>, vector<128x128xbf16>, vector<8x128xf32> -> vector<8x128xf32>
      %9 = arith.index_cast %arg5 : i32 to index
      %c0_6 = arith.constant 0 : index
      %c0_7 = arith.constant 0 : index
      %10 = vector.load %arg3[%9, %c0_6, %c0_7] : memref<2x1x128xf32, #tpu.memory_space<vmem>>, vector<1x1x128xf32>
      %11 = vector.shape_cast %10 : vector<1x1x128xf32> to vector<1x128xf32>
      %12 = vector.broadcast %11 : vector<1x128xf32> to vector<8x128xf32>
      %13 = arith.addf %8, %12 : vector<8x128xf32>
      %cst_8 = arith.constant 0.000000e+00 : f32
      %14 = vector.broadcast %cst_8 : f32 to vector<8x128xf32>
      %15 = arith.maximumf %13, %14 : vector<8x128xf32>
      scf.yield %15 : vector<8x128xf32>
    }
    %c2_i32_1 = arith.constant 2 : i32
    %c0_2 = arith.constant 0 : index
    %c0_3 = arith.constant 0 : index
    %3 = vector.load %arg4[%c0_2, %c0_3] : memref<8x128xf32, #tpu.memory_space<vmem>>, vector<8x128xf32>
    tpu.vector_store %arg4[%c0_2, %c0_3], %2 {strides = array<i32>} : memref<8x128xf32, #tpu.memory_space<vmem>>, vector<8x128xf32>,
    return
  }
  func.func @transform_0(%arg0: i32) -> (i32, i32) {
    %c0_i32 = arith.constant 0 : i32
    %c0_i32_0 = arith.constant 0 : i32
    return %arg0, %c0_i32 : i32, i32
  }
  func.func @transform_1(%arg0: i32) -> (i32, i32, i32) {
    %c0_i32 = arith.constant 0 : i32
    %c0_i32_0 = arith.constant 0 : i32
    %c0_i32_1 = arith.constant 0 : i32
    %c0_i32_2 = arith.constant 0 : i32
    return %c0_i32, %c0_i32_0, %c0_i32_1 : i32, i32, i32
  }
  func.func @transform_2(%arg0: i32) -> (i32, i32, i32) {
    %c0_i32 = arith.constant 0 : i32
    %c0_i32_0 = arith.constant 0 : i32
    %c0_i32_1 = arith.constant 0 : i32
    %c0_i32_2 = arith.constant 0 : i32
    return %c0_i32, %c0_i32_0, %c0_i32_1 : i32, i32, i32
  }
  func.func @transform_3(%arg0: i32) -> (i32, i32) {
    %c0_i32 = arith.constant 0 : i32
    %c0_i32_0 = arith.constant 0 : i32
    return %arg0, %c0_i32 : i32, i32
  }
}

</mosaic_0001>

<llo_original>
// kernel: supernet_forward.1
$region0: #{supernet_forward.1}
  #allocation0 [shape = 'u32[]', space=smem, size = 0x4, offset = 0x4, fixed_abs, tag = 'smem constant byte address 0x4 - core index']
  #allocation1 [shape = 'u32[72,128]{1,0:T(1,128)}', space=vmem, size = 0x9000, scoped, tag = 'internal scratch']
  %s0 = inlined_call_operand.vmem [shape: f32[16,128], index: 0, kind: input, shape index: {}]
  %s1 = inlined_call_operand.vmem [shape: bf16[2,128,128], index: 1, kind: input, shape index: {}]
  %s2 = inlined_call_operand.vmem [shape: f32[2,1,128], index: 2, kind: input, shape index: {}]
  %s3 = inlined_call_operand.vmem [shape: f32[16,128], index: 3, kind: output, shape index: {}]
  %s4 = sld [smem:[#allocation0]]
  $region52: #{supernet_forward.1} parent=0
    _
  %s6 = ssub.s32 1, %s4
  %s7 = scalar_select 0, %s6, %s4
  loop: start=0, step=1, limit=4
  $region2: #{supernet_forward.1} parent=0 // loop_pre_header
    _
  $region3: #{supernet_forward.1} parent=0 // loop_header
    %s9 = sphi 0, %s13
    %p10 = scmp.ge.s32.totalorder %s9, 4
    %s19 = sphi 0, %s21
    %s22 = sphi 0, %s19
    %s23 = sphi 0, %s22
    %s39 = sphi 0, %s23
    %s43 = sphi 0, %s43
    %s45 = sphi 0, %s43
    %s46 = sphi 0, %s45
    %s60 = sphi 0, %s46
    %s64 = sphi 0, %s64
    %s66 = sphi 0, %s64
    %s67 = sphi 0, %s66
    %s81 = sphi 0, %s67
    %s87 = sphi 0, %s89
    %s90 = sphi 0, %s87
    %s91 = sphi 0, %s90
    %s107 = sphi 0, %s91
  $region4: #{supernet_forward.1} parent=0 // loop_header_branch
    %12 = sbr.rel (%p10) target = $region8
  $region5: #{supernet_forward.1} parent=0 // loop_body
    %s14 = ssub.s32 %s9, 1
    %s15 = ssub.s32 %s9, 2
    %s16 = sadd.s32 %s9, 1
    %s17 = ssub.s32 %s9, %s16
    %p18 = scmp.eq.s32.totalorder %s17, 0
    %s20 = sadd.s32 %s19, 1
    %s21 = scalar_select %p18, %s19, %s20
    %p24 = pneg %p18
    %p25 = scmp.eq.s32.totalorder %s9, 1
    %p26 = por %p24, %p25
    %p27 = scmp.ne.s32.totalorder %s19, %s22
    %p28 = scmp.eq.s32.totalorder %s9, 0
    %p29 = por %p27, %p28
    %p30 = scmp.ne.s32.totalorder %s19, %s22
    %p31 = scmp.eq.s32.totalorder %s14, 1
    %p32 = por %p30, %p31
    %p33 = scmp.ne.s32.totalorder %s22, %s23
    %p34 = scmp.eq.s32.totalorder %s14, 0
    %p35 = por %p33, %p34
    %p36 = scmp.ne.s32.totalorder %s22, %s23
    %p37 = scmp.eq.s32.totalorder %s15, 1
    %p38 = por %p36, %p37
    %p40 = scmp.ne.s32.totalorder %s23, %s39
    %p41 = scmp.eq.s32.totalorder %s15, 0
    %p42 = por %p40, %p41
    %s44 = sadd.s32 %s43, 1
    %p47 = scmp.eq.s32.totalorder %s9, 1
    %p48 = scmp.ne.s32.totalorder %s43, %s45
    %p49 = scmp.eq.s32.totalorder %s9, 0
    %p50 = por %p48, %p49
    %p51 = scmp.ne.s32.totalorder %s43, %s45
    %p52 = scmp.eq.s32.totalorder %s14, 1
    %p53 = por %p51, %p52
    %p54 = scmp.ne.s32.totalorder %s45, %s46
    %p55 = scmp.eq.s32.totalorder %s14, 0
    %p56 = por %p54, %p55
    %p57 = scmp.ne.s32.totalorder %s45, %s46
    %p58 = scmp.eq.s32.totalorder %s15, 1
    %p59 = por %p57, %p58
    %p61 = scmp.ne.s32.totalorder %s46, %s60
    %p62 = scmp.eq.s32.totalorder %s15, 0
    %p63 = por %p61, %p62
    %s65 = sadd.s32 %s64, 1
    %p68 = scmp.eq.s32.totalorder %s9, 1
    %p69 = scmp.ne.s32.totalorder %s64, %s66
    %p70 = scmp.eq.s32.totalorder %s9, 0
    %p71 = por %p69, %p70
    %p72 = scmp.ne.s32.totalorder %s64, %s66
    %p73 = scmp.eq.s32.totalorder %s14, 1
    %p74 = por %p72, %p73
    %p75 = scmp.ne.s32.totalorder %s66, %s67
    %p76 = scmp.eq.s32.totalorder %s14, 0
    %p77 = por %p75, %p76
    %p78 = scmp.ne.s32.totalorder %s66, %s67
    %p79 = scmp.eq.s32.totalorder %s15, 1
    %p80 = por %p78, %p79
    %p82 = scmp.ne.s32.totalorder %s67, %s81
    %p83 = scmp.eq.s32.totalorder %s15, 0
    %p84 = por %p82, %p83
    %s85 = ssub.s32 %s9, %s16
    %p86 = scmp.eq.s32.totalorder %s85, 0
    %s88 = sadd.s32 %s87, 1
    %s89 = scalar_select %p86, %s87, %s88
    %p92 = pneg %p86
    %p93 = scmp.eq.s32.totalorder %s9, 1
    %p94 = por %p92, %p93
    %p95 = scmp.ne.s32.totalorder %s87, %s90
    %p96 = scmp.eq.s32.totalorder %s9, 0
    %p97 = por %p95, %p96
    %p98 = scmp.ne.s32.totalorder %s87, %s90
    %p99 = scmp.eq.s32.totalorder %s14, 1
    %p100 = por %p98, %p99
    %p101 = scmp.ne.s32.totalorder %s90, %s91
    %p102 = scmp.eq.s32.totalorder %s14, 0
    %p103 = por %p101, %p102
    %p104 = scmp.ne.s32.totalorder %s90, %s91
    %p105 = scmp.eq.s32.totalorder %s15, 1
    %p106 = por %p104, %p105
    %p108 = scmp.ne.s32.totalorder %s91, %s107
    %p109 = scmp.eq.s32.totalorder %s15, 0
    %p110 = por %p108, %p109
    %p111 = scmp.le.s32.totalorder 1, %s9
    %p112 = scmp.lt.s32.totalorder %s9, 3
    %p113 = pnand %p111, %p112
    %p114 = pneg %p113
    // Predicated region
    $region9: #{supernet_forward.1} parent=5 // pred_check
      _
    $region10: #{supernet_forward.1} parent=5 // pred_check_branch
      %116 = sbr.rel (%p113) target = $region12
    $region11: #{supernet_forward.1} parent=5 // pred_region
      %s117 = ssub.s32 %s9, 1
      // Predicated region
      $region13: #{supernet_forward.1} parent=11 // pred_check
        %p118 = pneg %p56
      $region14: #{supernet_forward.1} parent=11 // pred_check_branch
        %120 = sbr.rel (%p118) target = $region16
      $region15: #{supernet_forward.1} parent=11 // pred_region
        _
      $region16: #{supernet_forward.1} parent=11 // pred_fallthru
        _
      // Predicated region
      $region17: #{supernet_forward.1} parent=11 // pred_check
        %p121 = pneg %p77
      $region18: #{supernet_forward.1} parent=11 // pred_check_branch
        %123 = sbr.rel (%p121) target = $region20
      $region19: #{supernet_forward.1} parent=11 // pred_region
        _
      $region20: #{supernet_forward.1} parent=11 // pred_fallthru
        _
    $region12: #{supernet_forward.1} parent=5 // pred_fallthru
      _
    %p124 = scmp.lt.s32.totalorder %s9, 2
    // Predicated region
    $region21: #{supernet_forward.1} parent=5 // pred_check
      %p125 = pneg %p124
    $region22: #{supernet_forward.1} parent=5 // pred_check_branch
      %127 = sbr.rel (%p125) target = $region24
    $region23: #{supernet_forward.1} parent=5 // pred_region
      // Predicated region
      $region25: #{supernet_forward.1} parent=23 // pred_check
        %p128 = pneg %p29
      $region26: #{supernet_forward.1} parent=23 // pred_check_branch
        %130 = sbr.rel (%p128) target = $region28
      $region27: #{supernet_forward.1} parent=23 // pred_region
        %p131 = scmp.lt.s32.totalorder %s9, 1
        %s132 = scalar_select %p131, %s9, 1
        %s133 = smul.addr %s132, 8
        %s134 = scalar_lea.vmem %s0, %s133
      $region28: #{supernet_forward.1} parent=23 // pred_fallthru
        _
    $region24: #{supernet_forward.1} parent=5 // pred_fallthru
      _
    %p135 = scmp.le.s32.totalorder 1, %s9
    %p136 = scmp.lt.s32.totalorder %s9, 3
    %p137 = pnand %p135, %p136
    %p138 = pneg %p137
    // Predicated region
    $region29: #{supernet_forward.1} parent=5 // pred_check
      _
    $region30: #{supernet_forward.1} parent=5 // pred_check_branch
      %140 = sbr.rel (%p137) target = $region32
    $region31: #{supernet_forward.1} parent=5 // pred_region
      %s141 = ssub.s32 %s9, 1
      %p142 = scmp.lt.s32.totalorder %s14, 1
      %s143 = scalar_select %p142, %s14, 1
      %s144 = smul.addr %s143, 8
      %s145 = scalar_lea.vmem %s0, %s144
      %p146 = pneg %p35
      %p147 = pneg %p32
      %p148 = pneg %p56
      %p149 = pneg %p53
      %p150 = pneg %p77
      %p151 = pneg %p74
      %p152 = pneg %p103
      %p153 = pneg %p100
      %p154 = scmp.lt.s32.totalorder %s14, 1
      %s155 = scalar_select %p154, %s14, 1
      %s156 = smul.addr %s155, 8
      %s157 = scalar_lea.vmem %s3, %s156
      %p158 = scmp.lt.s32.totalorder %s14, 1
      %s159 = scalar_select %p158, %s14, 1
      %s160 = smul.addr %s159, 8
      %s161 = scalar_lea.vmem %s0, %s160
      %p162 = scmp.lt.s32.totalorder %s14, 1
      %s163 = scalar_select %p162, %s14, 1
      %s164 = smul.addr %s163, 8
      %s165 = scalar_lea.vmem %s3, %s164
      %v166 = vld [vmem:[%s161] sm:$0xff]
      loop: start=0, step=1, limit=2
      $region33: #{supernet_forward.1} parent=31 // loop_pre_header
        _
      $region34: #{supernet_forward.1} parent=31 // loop_header
        %s168 = sphi 0, %s172
        %p169 = scmp.ge.s32.totalorder %s168, 2
        %v173 = vphi %v166, %v260
      $region35: #{supernet_forward.1} parent=31 // loop_header_branch
        %171 = sbr.rel (%p169) target = $region39
      $region36: #{supernet_forward.1} parent=31 // loop_body
        %v174 = vpack.c.bf16 %v173, %v173
        %s175 = smul.u32 %s168, 16
        %s176 = smul.addr %s175, 4
        %s177 = scalar_lea.vmem %s1, %s176
        %v178 = vld [vmem:[%s177] sm:$0xf]
        %v179 = vld [vmem:[%s177 + $0x4] sm:$0xf]
        %v180 = vld [vmem:[%s177 + $0x8] sm:$0xf]
        %v181 = vld [vmem:[%s177 + $0xc] sm:$0xf]
        %v182 = vld [vmem:[%s177 + $0x10] sm:$0xf]
        %v183 = vld [vmem:[%s177 + $0x14] sm:$0xf]
        %v184 = vld [vmem:[%s177 + $0x18] sm:$0xf]
        %v185 = vld [vmem:[%s177 + $0x1c] sm:$0xf]
        %v186 = vld [vmem:[%s177 + $0x20] sm:$0xf]
        %v187 = vld [vmem:[%s177 + $0x24] sm:$0xf]
        %v188 = vld [vmem:[%s177 + $0x28] sm:$0xf]
        %v189 = vld [vmem:[%s177 + $0x2c] sm:$0xf]
        %v190 = vld [vmem:[%s177 + $0x30] sm:$0xf]
        %v191 = vld [vmem:[%s177 + $0x34] sm:$0xf]
        %v192 = vld [vmem:[%s177 + $0x38] sm:$0xf]
        %v193 = vld [vmem:[%s177 + $0x3c] sm:$0xf]
        %s194 = scalar_lea.vmem %s2, %s168
        %v195 = vld [vmem:[%s194] sm:$0x1]
        %v197 = vperm.slane %v195, 0
        %v215 = vunpack.c.l.b16 %v178
        %v216 = vunpack.c.l.b16 %v179
        %v217 = vunpack.c.l.b16 %v180
        %v218 = vunpack.c.l.b16 %v181
        %v219 = vunpack.c.l.b16 %v182
        %v220 = vunpack.c.l.b16 %v183
        %v221 = vunpack.c.l.b16 %v184
        %v222 = vunpack.c.l.b16 %v185
        %v223 = vunpack.c.l.b16 %v186
        %v224 = vunpack.c.l.b16 %v187
        %v225 = vunpack.c.l.b16 %v188
        %v226 = vunpack.c.l.b16 %v189
        %v227 = vunpack.c.l.b16 %v190
        %v228 = vunpack.c.l.b16 %v191
        %v229 = vunpack.c.l.b16 %v192
        %v230 = vunpack.c.l.b16 %v193
        %v231 = vpack.c.b16 %v216, %v215
        %v232 = vpack.c.b16 %v218, %v217
        %v233 = vpack.c.b16 %v220, %v219
        %v234 = vpack.c.b16 %v222, %v221
        %v235 = vpack.c.b16 %v224, %v223
        %v236 = vpack.c.b16 %v226, %v225
        %v237 = vpack.c.b16 %v228, %v227
        %v238 = vpack.c.b16 %v230, %v229
        %247 = vmatpush.bf16.msra.mxu0 %v238
        %248 = vmatpush.bf16.msra.mxu0 %v237
        %249 = vmatpush.bf16.msra.mxu0 %v236
        %250 = vmatpush.bf16.msra.mxu0 %v235
        %251 = vmatpush.bf16.msra.mxu0 %v234
        %252 = vmatpush.bf16.msra.mxu0 %v233
        %253 = vmatpush.bf16.msra.mxu0 %v232
        %254 = vmatpush.bf16.msra.mxu0 %v231
        %255 = vmatmul.bf16.gmra.mxu0 %v174
        %v256 = vpop.f32.mrf.mxu0
        %v257 = vadd.f32 %v197, %v256
        %v258 = vpop.f32.mrf.mxu0
        %259 = vdwg.mxu0
        %v260 = vmax.f32 %v257, 0.0
      $region37: #{supernet_forward.1} parent=31 // loop_footer
        %s172 = sadd.s32 1, %s168
      $region38: #{supernet_forward.1} parent=31 // loop_footer_branch
        %167 = sbr.rel target = $region34
      $region39: #{supernet_forward.1} parent=31 // loop_exit
        _
      %261 = vst [vmem:[%s165] sm:$0xff] %v173
      %p262 = scmp.lt.s32.totalorder %s14, 1
      %s263 = scalar_select %p262, %s14, 1
      %s264 = smul.addr %s263, 8
      %s265 = scalar_lea.vmem %s3, %s264
      // Predicated region
      $region40: #{supernet_forward.1} parent=31 // pred_check
        %p266 = pneg %p100
      $region41: #{supernet_forward.1} parent=31 // pred_check_branch
        %268 = sbr.rel (%p266) target = $region43
      $region42: #{supernet_forward.1} parent=31 // pred_region
        _
      $region43: #{supernet_forward.1} parent=31 // pred_fallthru
        _
    $region32: #{supernet_forward.1} parent=5 // pred_fallthru
      _
    %p269 = scmp.le.s32.totalorder 2, %s9
    // Predicated region
    $region44: #{supernet_forward.1} parent=5 // pred_check
      %p270 = pneg %p269
    $region45: #{supernet_forward.1} parent=5 // pred_check_branch
      %272 = sbr.rel (%p270) target = $region47
    $region46: #{supernet_forward.1} parent=5 // pred_region
      %s273 = ssub.s32 %s9, 2
      // Predicated region
      $region48: #{supernet_forward.1} parent=46 // pred_check
        %p274 = pneg %p106
      $region49: #{supernet_forward.1} parent=46 // pred_check_branch
        %276 = sbr.rel (%p274) target = $region51
      $region50: #{supernet_forward.1} parent=46 // pred_region
        %p277 = scmp.lt.s32.totalorder %s15, 1
        %s278 = scalar_select %p277, %s15, 1
        %s279 = smul.addr %s278, 8
        %s280 = scalar_lea.vmem %s3, %s279
      $region51: #{supernet_forward.1} parent=46 // pred_fallthru
        _
    $region47: #{supernet_forward.1} parent=5 // pred_fallthru
      _
  $region6: #{supernet_forward.1} parent=0 // loop_footer
    %s13 = sadd.s32 1, %s9
  $region7: #{supernet_forward.1} parent=0 // loop_footer_branch
    %8 = sbr.rel target = $region3
  $region8: #{supernet_forward.1} parent=0 // loop_exit
    _

</llo_original>
